<compile_context>
chip_gen: v5e
topology: v5e:2x2
jax: 0.10.0
libtpu: 0.0.40
codegen_flags: <defaults>
</compile_context>

<pallas_src>
import functools

import jax
import jax.numpy as jnp
from jax.experimental import pallas as pl
from jax.experimental.pallas import tpu as pltpu


def _round_up(v, m):
    return (v + m - 1) // m * m


def _aligned_divisor(total, target, step=128):
    """Largest multiple of `step` that divides `total` and is <= max(target, step)."""
    target = max(target, step)
    best = step
    t = step
    limit = min(target, total)
    while t <= limit:
        if total % t == 0:
            best = t
        t += step
    return best


def _tpu_topology():
    """(vmem_capacity_bytes, multi_core) with safe fallbacks."""
    vmem_cap = 64 * 1024 * 1024          # conservative (v7x per-TC)
    multi_core = False
    try:
        vmem_cap = int(pltpu.get_tpu_info().vmem_capacity_bytes)
    except Exception:
        pass
    try:
        kind = jax.devices()[0].device_kind.lower()
        multi_core = ("v7" in kind) or ("7x" in kind)
    except Exception:
        pass
    return vmem_cap, multi_core


def _tile_bytes(bm, bk, dmp, out_isz, use_scratch):
    return (
        2 * bm * dmp * 2          # x tiles (bf16, double-buffered)
        + 2 * dmp * bk * 2        # W1 slabs (bf16, double-buffered)
        + 2 * bk * dmp * 2        # W2 slabs (bf16, double-buffered)
        + 2 * (bk + dmp) * 4      # biases (f32)
        + 2 * bm * dmp * out_isz  # output tiles
        + (bm * dmp * 4 if use_scratch else 0)   # f32 accumulator scratch
        + bm * bk * 4             # f32 intermediate h
    )


# ----------------------------- kernels ------------------------------------


def _ffn_kernel_scratch(x_ref, w1_ref, b1_ref, w2_ref, b2_ref, o_ref, acc_ref):
    """Variant with a separate f32 accumulator (for non-f32 output dtypes)."""
    k = pl.program_id(1)

    @pl.when(k == 0)
    def _():
        # Fold b2 into the accumulator init.
        acc_ref[...] = jnp.broadcast_to(b2_ref[...], acc_ref.shape).astype(jnp.float32)

    h = jnp.dot(x_ref[...], w1_ref[...], preferred_element_type=jnp.float32)
    h = jnp.maximum(h + b1_ref[...], 0.0)
    # dropout == identity (eval mode)

    acc_ref[...] += jnp.dot(h.astype(w2_ref.dtype), w2_ref[...],
                            preferred_element_type=jnp.float32)

    @pl.when(k == pl.num_programs(1) - 1)
    def _():
        o_ref[...] = acc_ref[...].astype(o_ref.dtype)


def _ffn_kernel_accout(x_ref, w1_ref, b1_ref, w2_ref, b2_ref, o_ref):
    """Variant that accumulates directly into the (float32) output block."""
    k = pl.program_id(1)

    @pl.when(k == 0)
    def _():
        o_ref[...] = jnp.broadcast_to(b2_ref[...], o_ref.shape).astype(o_ref.dtype)

    h = jnp.dot(x_ref[...], w1_ref[...], preferred_element_type=jnp.float32)
    h = jnp.maximum(h + b1_ref[...], 0.0)
    # dropout == identity (eval mode)

    o_ref[...] += jnp.dot(h.astype(w2_ref.dtype), w2_ref[...],
                          preferred_element_type=jnp.float32)


# ----------------------------- wrapper -------------------------------------


def prepare_ffn_params(w1, b1, w2, b2):
    """One-time conversion: cast weights to bf16, biases to f32, zero-pad both
    d_model and d_ff to multiples of 128 so every in-kernel access is full-lane.

    w1: (d_model, d_ff)   b1: (d_ff,)
    w2: (d_ff, d_model)   b2: (d_model,)
    """
    d_model, d_ff = w1.shape
    dmp = _round_up(d_model, 128)
    dfp = _round_up(d_ff, 128)
    if dmp != d_model or dfp != d_ff:
        w1 = jnp.pad(w1, ((0, dmp - d_model), (0, dfp - d_ff)))
        w2 = jnp.pad(w2, ((0, dfp - d_ff), (0, dmp - d_model)))
        b1 = jnp.pad(b1, (0, dfp - d_ff))
        b2 = jnp.pad(b2, (0, dmp - d_model))
    return (w1.astype(jnp.bfloat16),
            b1.astype(jnp.float32).reshape(1, dfp),
            w2.astype(jnp.bfloat16),
            b2.astype(jnp.float32).reshape(1, dmp))


@functools.partial(jax.jit, static_argnames=("block_m", "block_k"))
def feed_forward(x, w1p, b1p, w2p, b2p, *, block_m=None, block_k=None):
    """Fused FFN forward: relu(x @ W1 + b1) @ W2 + b2 (eval-mode dropout).

    x: (..., d_model).  w1p/b1p/w2p/b2p must come from prepare_ffn_params
    (already bf16 / f32 and padded to multiples of 128).
    """
    d_model = x.shape[-1]
    dmp, dfp = w1p.shape
    assert w2p.shape == (dfp, dmp) and b1p.shape == (1, dfp) and b2p.shape == (1, dmp)
    assert dmp >= d_model

    lead = x.shape[:-1]
    m = 1
    for s in lead:
        m *= s
    out_dtype = x.dtype
    out_isz = jnp.dtype(out_dtype).itemsize

    # ---- generation-aware tiling (all static at trace time) ----
    vmem_cap, multi_core = _tpu_topology()
    budget = int(vmem_cap * 0.8)
    big_vmem = vmem_cap >= (96 << 20)          # v5e / v6e (128 MiB) vs v7x (64 MiB)

    acc_into_out = (out_dtype == jnp.float32)
    use_scratch = not acc_into_out

    bm_target = block_m if block_m is not None else (512 if big_vmem else 256)
    bm = max(16, _round_up(min(bm_target, _round_up(m, 16)), 16))
    bk_target = block_k if block_k is not None else (1024 if big_vmem else 512)
    bk = _aligned_divisor(dfp, bk_target)

    # Shrink bk then bm until the double-buffered tile footprint fits VMEM.
    while _tile_bytes(bm, bk, dmp, out_isz, use_scratch) > budget and bk > 128:
        bk = _aligned_divisor(dfp, bk // 2)
    while _tile_bytes(bm, bk, dmp, out_isz, use_scratch) > budget and bm > 16:
        bm = max(16, _round_up(bm // 2, 16))

    # On multi-TC chips, make sure the parallel row axis has >= 2 tiles.
    if multi_core and pl.cdiv(m, bm) == 1 and m >= 32:
        bm = max(16, _round_up(pl.cdiv(m, 2), 16))

    grid = (pl.cdiv(m, bm), dfp // bk)

    # ---- activation prep (cast is cheap; pad only when actually needed) ----
    x2d = x.reshape(m, d_model).astype(jnp.bfloat16)
    if dmp != d_model:
        x2d = jnp.pad(x2d, ((0, 0), (0, dmp - d_model)))

    # ---- VMEM limit: derived from the tile budget, clamped below capacity ----
    tile_bytes = _tile_bytes(bm, bk, dmp, out_isz, use_scratch)
    vmem_limit = min(max(int(tile_bytes * 1.3) + (4 << 20), 32 << 20),
                     int(vmem_cap * 0.9))

    cost = pl.CostEstimate(
        flops=int(4 * m * dmp * dfp),
        transcendentals=0,
        bytes_accessed=int(m * dmp * 2                       # x (bf16)
                           + 2 * dmp * dfp * 2 * grid[0]     # W1+W2 per row tile
                           + (dfp + dmp) * 4                 # biases
                           + m * dmp * out_isz),             # output
    )

    kernel = _ffn_kernel_accout if acc_into_out else _ffn_kernel_scratch
    scratch_shapes = [] if acc_into_out else [pltpu.VMEM((bm, dmp), jnp.float32)]

    out = pl.pallas_call(
        kernel,
        out_shape=jax.ShapeDtypeStruct((m, dmp), out_dtype),
        grid_spec=pltpu.PrefetchScalarGridSpec(
            num_scalar_prefetch=0,
            grid=grid,
            in_specs=[
                pl.BlockSpec((bm, dmp), lambda i, k: (i, 0)),   # x row tile
                pl.BlockSpec((dmp, bk), lambda i, k: (0, k)),   # W1 d_ff slab
                pl.BlockSpec((1, bk), lambda i, k: (0, k)),     # b1 slab
                pl.BlockSpec((bk, dmp), lambda i, k: (k, 0)),   # W2 d_ff slab
                pl.BlockSpec((1, dmp), lambda i, k: (0, 0)),    # b2
            ],
            out_specs=pl.BlockSpec((bm, dmp), lambda i, k: (i, 0)),
            scratch_shapes=scratch_shapes,
        ),
        compiler_params=pltpu.CompilerParams(
            dimension_semantics=("parallel", "arbitrary"),
            vmem_limit_bytes=vmem_limit,
        ),
        cost_estimate=cost,
    )(x2d, w1p, b1p, w2p, b2p)

    if dmp != d_model:
        out = out[:, :d_model]
    return out.reshape(*lead, d_model)


# ----------------------------- test ----------------------------------------


def _init_linear(key, in_features, out_features, dtype=jnp.float32):
    # matches nn.Linear default init: U(-1/sqrt(in), 1/sqrt(in)) for W and b
    kw, kb = jax.random.split(key)
    bound = 1.0 / (in_features ** 0.5)
    # store W already transposed to (in, out) for row-major matmul
    w = jax.random.uniform(kw, (in_features, out_features), dtype, -bound, bound)
    b = jax.random.uniform(kb, (out_features,), dtype, -bound, bound)
    return w, b


if __name__ == "__main__":
    # small, module-consistent shapes: batch=2, seq=8, d_model=32, d_ff=64
    batch, seq, d_model, d_ff = 2, 8, 32, 64

    key = jax.random.PRNGKey(0)
    kx, k1, k2 = jax.random.split(key, 3)

    x = jax.random.normal(kx, (batch, seq, d_model), jnp.float32)
    w1, b1 = _init_linear(k1, d_model, d_ff)
    w2, b2 = _init_linear(k2, d_ff, d_model)

    # One-time weight conversion (cast + pad) outside the jitted forward.
    w1p, b1p, w2p, b2p = prepare_ffn_params(w1, b1, w2, b2)

    y = feed_forward(x, w1p, b1p, w2p, b2p)
    y = jax.block_until_ready(y)

    # reference check (pure JAX, mimicking the kernel's bf16 operand rounding)
    xb = x.astype(jnp.bfloat16).astype(jnp.float32)
    w1b = w1.astype(jnp.bfloat16).astype(jnp.float32)
    w2b = w2.astype(jnp.bfloat16).astype(jnp.float32)
    h_ref = jnp.maximum(xb @ w1b + b1, 0.0)
    ref = h_ref.astype(jnp.bfloat16).astype(jnp.float32) @ w2b + b2

    assert y.shape == (batch, seq, d_model)
    assert jnp.allclose(y, ref, atol=2e-2, rtol=2e-2), (
        float(jnp.max(jnp.abs(y - ref))))

    print("KERNEL_OK")
</pallas_src>

<mosaic_0001>
module attributes {stable_mosaic.version = 11 : i64} {
  func.func @_ffn_kernel_accout(%arg0: i32, %arg1: i32, %arg2: memref<16x128xbf16, #tpu.memory_space<vmem>>, %arg3: memref<128x128xbf16, #tpu.memory_space<vmem>>, %arg4: memref<1x128xf32, #tpu.memory_space<vmem>>, %arg5: memref<128x128xbf16, #tpu.memory_space<vmem>>, %arg6: memref<1x128xf32, #tpu.memory_space<vmem>>, %arg7: memref<16x128xf32, #tpu.memory_space<vmem>>) attributes {dimension_semantics = [#tpu.dimension_semantics<parallel>, #tpu.dimension_semantics<arbitrary>], iteration_bounds = array<i64: 1, 1>, scalar_prefetch = 0 : i64, scratch_operands = 0 : i64, tpu.core_type = #tpu.core_type<tc>, window_params = [{transform_indices = @transform_0, window_bounds = array<i64: 16, 128>}, {transform_indices = @transform_1, window_bounds = array<i64: 128, 128>}, {transform_indices = @transform_2, window_bounds = array<i64: 1, 128>}, {transform_indices = @transform_3, window_bounds = array<i64: 128, 128>}, {pipeline_mode = #tpu.pipeline_mode<synchronous>, transform_indices = @transform_4, window_bounds = array<i64: 1, 128>}, {transform_indices = @transform_5, window_bounds = array<i64: 16, 128>}]} {
    %c0_i32 = arith.constant 0 : i32
    %0 = arith.cmpi eq, %arg1, %c0_i32 : i32
    %1 = arith.extui %0 : i1 to i32
    %c0_i32_0 = arith.constant 0 : i32
    %2 = arith.cmpi ne, %1, %c0_i32_0 : i32
    scf.if %2 {
      %c0_14 = arith.constant 0 : index
      %c0_15 = arith.constant 0 : index
      %17 = vector.load %arg6[%c0_14, %c0_15] : memref<1x128xf32, #tpu.memory_space<vmem>>, vector<1x128xf32>
      %18 = vector.shape_cast %17 : vector<1x128xf32> to vector<1x128xf32>
      %19 = vector.broadcast %18 : vector<1x128xf32> to vector<16x128xf32>
      %c0_16 = arith.constant 0 : index
      %c0_17 = arith.constant 0 : index
      %20 = vector.load %arg7[%c0_16, %c0_17] : memref<16x128xf32, #tpu.memory_space<vmem>>, vector<16x128xf32>
      tpu.vector_store %arg7[%c0_16, %c0_17], %19 {strides = array<i32>} : memref<16x128xf32, #tpu.memory_space<vmem>>, vector<16x128xf32>,
    } else {
    }
    %c0 = arith.constant 0 : index
    %c0_1 = arith.constant 0 : index
    %3 = vector.load %arg2[%c0, %c0_1] : memref<16x128xbf16, #tpu.memory_space<vmem>>, vector<16x128xbf16>
    %c0_2 = arith.constant 0 : index
    %c0_3 = arith.constant 0 : index
    %4 = vector.load %arg3[%c0_2, %c0_3] : memref<128x128xbf16, #tpu.memory_space<vmem>>, vector<128x128xbf16>
    %cst = arith.constant dense<0.000000e+00> : vector<16x128xf32>
    %5 = tpu.matmul %3, %4, %cst {dimension_numbers = #tpu.dot_dimension_numbers<[1], [0], [0], [1], [0, 0, 1, 1], [], []>} : vector<16x128xbf16>, vector<128x128xbf16>, vector<16x128xf32> -> vector<16x128xf32>
    %c0_4 = arith.constant 0 : index
    %c0_5 = arith.constant 0 : index
    %6 = vector.load %arg4[%c0_4, %c0_5] : memref<1x128xf32, #tpu.memory_space<vmem>>, vector<1x128xf32>
    %7 = vector.broadcast %6 : vector<1x128xf32> to vector<16x128xf32>
    %8 = arith.addf %5, %7 : vector<16x128xf32>
    %cst_6 = arith.constant 0.000000e+00 : f32
    %9 = vector.broadcast %cst_6 : f32 to vector<16x128xf32>
    %10 = arith.maximumf %8, %9 : vector<16x128xf32>
    %c0_7 = arith.constant 0 : index
    %c0_8 = arith.constant 0 : index
    %11 = vector.load %arg7[%c0_7, %c0_8] : memref<16x128xf32, #tpu.memory_space<vmem>>, vector<16x128xf32>
    %12 = arith.truncf %10 : vector<16x128xf32> to vector<16x128xbf16>
    %c0_9 = arith.constant 0 : index
    %c0_10 = arith.constant 0 : index
    %13 = vector.load %arg5[%c0_9, %c0_10] : memref<128x128xbf16, #tpu.memory_space<vmem>>, vector<128x128xbf16>
    %cst_11 = arith.constant dense<0.000000e+00> : vector<16x128xf32>
    %14 = tpu.matmul %12, %13, %cst_11 {dimension_numbers = #tpu.dot_dimension_numbers<[1], [0], [0], [1], [0, 0, 1, 1], [], []>} : vector<16x128xbf16>, vector<128x128xbf16>, vector<16x128xf32> -> vector<16x128xf32>
    %15 = arith.addf %11, %14 : vector<16x128xf32>
    %c0_12 = arith.constant 0 : index
    %c0_13 = arith.constant 0 : index
    %16 = vector.load %arg7[%c0_12, %c0_13] : memref<16x128xf32, #tpu.memory_space<vmem>>, vector<16x128xf32>
    tpu.vector_store %arg7[%c0_12, %c0_13], %15 {strides = array<i32>} : memref<16x128xf32, #tpu.memory_space<vmem>>, vector<16x128xf32>,
    return
  }
  func.func @transform_0(%arg0: i32, %arg1: i32) -> (i32, i32) {
    %c0_i32 = arith.constant 0 : i32
    %c0_i32_0 = arith.constant 0 : i32
    return %arg0, %c0_i32 : i32, i32
  }
  func.func @transform_1(%arg0: i32, %arg1: i32) -> (i32, i32) {
    %c0_i32 = arith.constant 0 : i32
    %c0_i32_0 = arith.constant 0 : i32
    return %c0_i32, %arg1 : i32, i32
  }
  func.func @transform_2(%arg0: i32, %arg1: i32) -> (i32, i32) {
    %c0_i32 = arith.constant 0 : i32
    %c0_i32_0 = arith.constant 0 : i32
    return %c0_i32, %arg1 : i32, i32
  }
  func.func @transform_3(%arg0: i32, %arg1: i32) -> (i32, i32) {
    %c0_i32 = arith.constant 0 : i32
    %c0_i32_0 = arith.constant 0 : i32
    return %arg1, %c0_i32 : i32, i32
  }
  func.func @transform_4(%arg0: i32, %arg1: i32) -> (i32, i32) {
    %c0_i32 = arith.constant 0 : i32
    %c0_i32_0 = arith.constant 0 : i32
    %c0_i32_1 = arith.constant 0 : i32
    return %c0_i32, %c0_i32_0 : i32, i32
  }
  func.func @transform_5(%arg0: i32, %arg1: i32) -> (i32, i32) {
    %c0_i32 = arith.constant 0 : i32
    %c0_i32_0 = arith.constant 0 : i32
    return %arg0, %c0_i32 : i32, i32
  }
}

</mosaic_0001>

<llo_original>
// kernel: feed_forward.1
$region0: #{feed_forward.1}
  #allocation0 [shape = 'u32[]', space=smem, size = 0x4, offset = 0x4, fixed_abs, tag = 'smem constant byte address 0x4 - core index']
  #allocation1 [shape = 'u32[72,128]{1,0:T(1,128)}', space=vmem, size = 0x9000, scoped, tag = 'internal scratch']
  %s0 = inlined_call_operand.vmem [shape: bf16[16,128], index: 0, kind: input, shape index: {}]
  %s1 = inlined_call_operand.hbm [shape: bf16[128,128], index: 1, kind: input, shape index: {}]
  %s2 = inlined_call_operand.vmem [shape: f32[1,128], index: 2, kind: input, shape index: {}]
  %s3 = inlined_call_operand.hbm [shape: bf16[128,128], index: 3, kind: input, shape index: {}]
  %s4 = inlined_call_operand.vmem [shape: f32[1,128], index: 4, kind: input, shape index: {}]
  %s5 = inlined_call_operand.vmem [shape: f32[16,128], index: 5, kind: output, shape index: {}]
  %s6 = sld [smem:[#allocation0]]
  $region42: #{feed_forward.1} parent=0
    _
  %s8 = ssub.s32 1, %s6
  %s9 = scalar_select 0, %s8, %s6
  $region1: #{feed_forward.1} parent=0
    #allocation2 [shape = 'u8[32768]{0}', space=vmem, size = 0x8000, scoped, tag = 'input window, operand 1, single buffered']
    #allocation3 [shape = 's32[1]{0}', space=sflag, size = 0x4, scoped, tag = 'scoped memory for feed_forward.1']
    #allocation4 [shape = 'u8[32768]{0}', space=vmem, size = 0x8000, scoped, tag = 'input window, operand 3, single buffered']
    #allocation5 [shape = 's32[1]{0}', space=sflag, size = 0x4, scoped, tag = 'scoped memory for feed_forward.1']
    %10 = vsyncpa [#allocation3], 0
    %11 = vsyncpa [#allocation5], 0
    // Predicated region
    $region2: #{feed_forward.1} parent=1 // pred_check
      _
    $region3: #{feed_forward.1} parent=1 // pred_check_branch
      %13 = sbr.rel (0) target = $region5
    $region4: #{feed_forward.1} parent=1 // pred_region
      _
    $region5: #{feed_forward.1} parent=1 // pred_fallthru
      _
    // Predicated region
    $region6: #{feed_forward.1} parent=1 // pred_check
      _
    $region7: #{feed_forward.1} parent=1 // pred_check_branch
      %15 = sbr.rel (0) target = $region9
    $region8: #{feed_forward.1} parent=1 // pred_region
      %17 = vsyncadd [#allocation3], 0
      %s18 = sshll.u32 %s1, 4
      %s19 = int_to_ptr.hbm [resolvable:$true] %s18
      %s20 = sshll.u32 [#allocation2], 4
      %s21 = int_to_ptr.vmem [resolvable:$true] %s20
      %26 = dma.hbm_to_vmem [thread:$0]  %s19, 1024, %s21, [#allocation3], 64, 64, 4
    $region9: #{feed_forward.1} parent=1 // pred_fallthru
      _
    // Predicated region
    $region10: #{feed_forward.1} parent=1 // pred_check
      _
    $region11: #{feed_forward.1} parent=1 // pred_check_branch
      %28 = sbr.rel (0) target = $region13
    $region12: #{feed_forward.1} parent=1 // pred_region
      _
    $region13: #{feed_forward.1} parent=1 // pred_fallthru
      _
    // Predicated region
    $region14: #{feed_forward.1} parent=1 // pred_check
      _
    $region15: #{feed_forward.1} parent=1 // pred_check_branch
      %30 = sbr.rel (0) target = $region17
    $region16: #{feed_forward.1} parent=1 // pred_region
      %32 = vsyncadd [#allocation5], 0
      %s33 = sshll.u32 %s3, 4
      %s34 = int_to_ptr.hbm [resolvable:$true] %s33
      %s35 = sshll.u32 [#allocation4], 4
      %s36 = int_to_ptr.vmem [resolvable:$true] %s35
      %41 = dma.hbm_to_vmem [thread:$0]  %s34, 1024, %s36, [#allocation5], 64, 64, 4
    $region17: #{feed_forward.1} parent=1 // pred_fallthru
      _
    // Predicated region
    $region18: #{feed_forward.1} parent=1 // pred_check
      _
    $region19: #{feed_forward.1} parent=1 // pred_check_branch
      %43 = sbr.rel (0) target = $region21
    $region20: #{feed_forward.1} parent=1 // pred_region
      _
    $region21: #{feed_forward.1} parent=1 // pred_fallthru
      _
    // Predicated region
    $region22: #{feed_forward.1} parent=1 // pred_check
      _
    $region23: #{feed_forward.1} parent=1 // pred_check_branch
      %45 = sbr.rel (0) target = $region25
    $region24: #{feed_forward.1} parent=1 // pred_region
      %47 = dma.done [#allocation3], 1024
    $region25: #{feed_forward.1} parent=1 // pred_fallthru
      _
    // Predicated region
    $region26: #{feed_forward.1} parent=1 // pred_check
      _
    $region27: #{feed_forward.1} parent=1 // pred_check_branch
      %49 = sbr.rel (0) target = $region29
    $region28: #{feed_forward.1} parent=1 // pred_region
      %51 = dma.done [#allocation5], 1024
    $region29: #{feed_forward.1} parent=1 // pred_fallthru
      _
    %p52 = scmp.eq.s32.totalorder 0, 0
    // Predicated region
    $region30: #{feed_forward.1} parent=1 // pred_check
      %p53 = pneg %p52
    $region31: #{feed_forward.1} parent=1 // pred_check_branch
      %55 = sbr.rel (%p53) target = $region33
    $region32: #{feed_forward.1} parent=1 // pred_region
      %v56 = vld [vmem:[%s4] sm:$0x1]
      %v58 = vperm.slane %v56, 0
      %60 = vst [vmem:[%s5] sm:$0xff] %v58
      %61 = vst [vmem:[%s5 + $0x8] sm:$0xff] %v58
    $region33: #{feed_forward.1} parent=1 // pred_fallthru
      _
    %v62 = vld [vmem:[%s0] sm:$0xf]
    %v63 = vld [vmem:[%s0 + $0x4] sm:$0xf]
    %v64 = vld [vmem:[#allocation2] sm:$0xf]
    %v65 = vld [vmem:[#allocation2 + $0x4] sm:$0xf]
    %v66 = vld [vmem:[#allocation2 + $0x8] sm:$0xf]
    %v67 = vld [vmem:[#allocation2 + $0xc] sm:$0xf]
    %v68 = vld [vmem:[#allocation2 + $0x10] sm:$0xf]
    %v69 = vld [vmem:[#allocation2 + $0x14] sm:$0xf]
    %v70 = vld [vmem:[#allocation2 + $0x18] sm:$0xf]
    %v71 = vld [vmem:[#allocation2 + $0x1c] sm:$0xf]
    %v72 = vld [vmem:[#allocation2 + $0x20] sm:$0xf]
    %v73 = vld [vmem:[#allocation2 + $0x24] sm:$0xf]
    %v74 = vld [vmem:[#allocation2 + $0x28] sm:$0xf]
    %v75 = vld [vmem:[#allocation2 + $0x2c] sm:$0xf]
    %v76 = vld [vmem:[#allocation2 + $0x30] sm:$0xf]
    %v77 = vld [vmem:[#allocation2 + $0x34] sm:$0xf]
    %v78 = vld [vmem:[#allocation2 + $0x38] sm:$0xf]
    %v79 = vld [vmem:[#allocation2 + $0x3c] sm:$0xf]
    %v80 = vld [vmem:[%s2] sm:$0x1]
    %v82 = vperm.slane %v80, 0
    %v86 = vunpack.c.l.b16 %v62
    %v87 = vunpack.c.l.b16 %v63
    %v88 = vpack.c.b16 %v87, %v86
    %v106 = vunpack.c.l.b16 %v64
    %v107 = vunpack.c.l.b16 %v65
    %v108 = vunpack.c.l.b16 %v66
    %v109 = vunpack.c.l.b16 %v67
    %v110 = vunpack.c.l.b16 %v68
    %v111 = vunpack.c.l.b16 %v69
    %v112 = vunpack.c.l.b16 %v70
    %v113 = vunpack.c.l.b16 %v71
    %v114 = vunpack.c.l.b16 %v72
    %v115 = vunpack.c.l.b16 %v73
    %v116 = vunpack.c.l.b16 %v74
    %v117 = vunpack.c.l.b16 %v75
    %v118 = vunpack.c.l.b16 %v76
    %v119 = vunpack.c.l.b16 %v77
    %v120 = vunpack.c.l.b16 %v78
    %v121 = vunpack.c.l.b16 %v79
    %v122 = vpack.c.b16 %v107, %v106
    %v123 = vpack.c.b16 %v109, %v108
    %v124 = vpack.c.b16 %v111, %v110
    %v125 = vpack.c.b16 %v113, %v112
    %v126 = vpack.c.b16 %v115, %v114
    %v127 = vpack.c.b16 %v117, %v116
    %v128 = vpack.c.b16 %v119, %v118
    %v129 = vpack.c.b16 %v121, %v120
    %138 = vmatpush.bf16.msra.mxu0 %v129
    %139 = vmatpush.bf16.msra.mxu0 %v128
    %140 = vmatpush.bf16.msra.mxu0 %v127
    %141 = vmatpush.bf16.msra.mxu0 %v126
    %142 = vmatpush.bf16.msra.mxu0 %v125
    %143 = vmatpush.bf16.msra.mxu0 %v124
    %144 = vmatpush.bf16.msra.mxu0 %v123
    %145 = vmatpush.bf16.msra.mxu0 %v122
    %146 = vmatmul.bf16.gmra.mxu0 %v88
    %v147 = vpop.f32.mrf.mxu0
    %v148 = vadd.f32 %v82, %v147
    %v149 = vpop.f32.mrf.mxu0
    %v150 = vadd.f32 %v82, %v149
    %151 = vdwg.mxu0
    %v152 = vmax.f32 %v148, 0.0
    %v153 = vmax.f32 %v150, 0.0
    %v154 = vld [vmem:[%s5] sm:$0xff]
    %v155 = vld [vmem:[%s5 + $0x8] sm:$0xff]
    %v156 = vpack.c.bf16 %v153, %v152
    %v157 = vld [vmem:[#allocation4] sm:$0xf]
    %v158 = vld [vmem:[#allocation4 + $0x4] sm:$0xf]
    %v159 = vld [vmem:[#allocation4 + $0x8] sm:$0xf]
    %v160 = vld [vmem:[#allocation4 + $0xc] sm:$0xf]
    %v161 = vld [vmem:[#allocation4 + $0x10] sm:$0xf]
    %v162 = vld [vmem:[#allocation4 + $0x14] sm:$0xf]
    %v163 = vld [vmem:[#allocation4 + $0x18] sm:$0xf]
    %v164 = vld [vmem:[#allocation4 + $0x1c] sm:$0xf]
    %v165 = vld [vmem:[#allocation4 + $0x20] sm:$0xf]
    %v166 = vld [vmem:[#allocation4 + $0x24] sm:$0xf]
    %v167 = vld [vmem:[#allocation4 + $0x28] sm:$0xf]
    %v168 = vld [vmem:[#allocation4 + $0x2c] sm:$0xf]
    %v169 = vld [vmem:[#allocation4 + $0x30] sm:$0xf]
    %v170 = vld [vmem:[#allocation4 + $0x34] sm:$0xf]
    %v171 = vld [vmem:[#allocation4 + $0x38] sm:$0xf]
    %v172 = vld [vmem:[#allocation4 + $0x3c] sm:$0xf]
    %v189 = vunpack.c.l.b16 %v157
    %v190 = vunpack.c.l.b16 %v158
    %v191 = vunpack.c.l.b16 %v159
    %v192 = vunpack.c.l.b16 %v160
    %v193 = vunpack.c.l.b16 %v161
    %v194 = vunpack.c.l.b16 %v162
    %v195 = vunpack.c.l.b16 %v163
    %v196 = vunpack.c.l.b16 %v164
    %v197 = vunpack.c.l.b16 %v165
    %v198 = vunpack.c.l.b16 %v166
    %v199 = vunpack.c.l.b16 %v167
    %v200 = vunpack.c.l.b16 %v168
    %v201 = vunpack.c.l.b16 %v169
    %v202 = vunpack.c.l.b16 %v170
    %v203 = vunpack.c.l.b16 %v171
    %v204 = vunpack.c.l.b16 %v172
    %v205 = vpack.c.b16 %v190, %v189
    %v206 = vpack.c.b16 %v192, %v191
    %v207 = vpack.c.b16 %v194, %v193
    %v208 = vpack.c.b16 %v196, %v195
    %v209 = vpack.c.b16 %v198, %v197
    %v210 = vpack.c.b16 %v200, %v199
    %v211 = vpack.c.b16 %v202, %v201
    %v212 = vpack.c.b16 %v204, %v203
    %221 = vmatpush.bf16.msra.mxu0 %v212
    %222 = vmatpush.bf16.msra.mxu0 %v211
    %223 = vmatpush.bf16.msra.mxu0 %v210
    %224 = vmatpush.bf16.msra.mxu0 %v209
    %225 = vmatpush.bf16.msra.mxu0 %v208
    %226 = vmatpush.bf16.msra.mxu0 %v207
    %227 = vmatpush.bf16.msra.mxu0 %v206
    %228 = vmatpush.bf16.msra.mxu0 %v205
    %229 = vmatmul.bf16.gmra.mxu0 %v156
    %v230 = vpop.f32.mrf.mxu0
    %v231 = vadd.f32 0.0, %v230
    %v232 = vpop.f32.mrf.mxu0
    %v233 = vadd.f32 0.0, %v232
    %234 = vdwg.mxu0
    %v235 = vadd.f32 %v154, %v231
    %v236 = vadd.f32 %v155, %v233
    %237 = vst [vmem:[%s5] sm:$0xff] %v235
    %238 = vst [vmem:[%s5 + $0x8] sm:$0xff] %v236
    // Predicated region
    $region34: #{feed_forward.1} parent=1 // pred_check
      _
    $region35: #{feed_forward.1} parent=1 // pred_check_branch
      %240 = sbr.rel (0) target = $region37
    $region36: #{feed_forward.1} parent=1 // pred_region
      _
    $region37: #{feed_forward.1} parent=1 // pred_fallthru
      _
    // Predicated region
    $region38: #{feed_forward.1} parent=1 // pred_check
      _
    $region39: #{feed_forward.1} parent=1 // pred_check_branch
      %242 = sbr.rel (0) target = $region41
    $region40: #{feed_forward.1} parent=1 // pred_region
      _
    $region41: #{feed_forward.1} parent=1 // pred_fallthru
      _
    %243 = vsyncpa [#allocation3], 1
    %244 = vsyncpa [#allocation5], 1

</llo_original>
